<compile_context>
chip_gen: v5e
topology: v5e:2x2
jax: 0.10.0
libtpu: 0.0.40
codegen_flags: <defaults>
</compile_context>

<pallas_src>
import jax
import jax.numpy as jnp
from jax.experimental import pallas as pl
from jax.experimental.pallas import tpu as pltpu

_MIB = 1024 * 1024


def _concat_kernel(sparse_ref, dense_ref, out_ref):
    # sparse_ref: (TB, F*D), dense_ref: (TB, D), out_ref: (TB, F*D + D)
    fd = sparse_ref.shape[1]
    # Bytes-dominant, lane-dense slab first (unmasked vst when F*D % 128 == 0).
    out_ref[:, :fd] = sparse_ref[...]
    # Narrow dense tail.  If F*D % 128 != 0 this lowers to a lane-rotated
    # masked store, but the bytes are tiny and it hides under the block DMAs.
    out_ref[:, fd:] = dense_ref[...]


def _sublane_multiple(dtype) -> int:
    # f32 -> 8, bf16/f16 -> 16, int8/fp8 -> 32 (sublane packing rule).
    itemsize = jnp.dtype(dtype).itemsize
    return max(8, 32 // itemsize)


def _physical_vmem_bytes() -> int:
    try:
        info = pltpu.get_tpu_info()
        return int(getattr(info, "vmem_capacity_bytes", 128 * _MIB))
    except Exception:
        return 128 * _MIB  # conservative default: assume a 128 MiB part


def simple_interaction_arch(dense_features: jax.Array,
                            sparse_features: jax.Array,
                            *,
                            tile_b: int | None = None) -> jax.Array:
    """JAX/Pallas equivalent of SimpleInteractionArch.forward.

    Args:
      dense_features:  (B, D)
      sparse_features: (B, F, D)
      tile_b: optional override of the batch tile size.

    Returns:
      (B, F*D + D) tensor: [sparse.reshape(B, F*D), dense] concatenated on dim 1.
    """
    B, D = dense_features.shape
    Bs, F, Ds = sparse_features.shape
    assert B == Bs and D == Ds, "shape mismatch between dense and sparse features"
    assert dense_features.dtype == sparse_features.dtype, "dtype mismatch"

    dtype = dense_features.dtype
    itemsize = jnp.dtype(dtype).itemsize
    fd = F * D
    out_width = fd + D
    sub = _sublane_multiple(dtype)
    row_bytes = out_width * itemsize

    # --- generation-aware VMEM budget / limit --------------------------------
    physical_vmem = _physical_vmem_bytes()
    if physical_vmem <= 64 * _MIB:          # v7x: 64 MiB per TensorCore
        budget_bytes = 24 * _MIB            # resident (double-buffered) target
        vmem_limit = 48 * _MIB              # leave headroom for Mosaic scratch
    else:                                    # v5e / v6e: 128 MiB per core
        budget_bytes = 48 * _MIB
        vmem_limit = 64 * _MIB              # above the 16/32 MiB scoped defaults

    # --- pick a batch tile (byte-based, no arbitrary row cap) ----------------
    # Resident VMEM ~= 4 * TB * row_bytes (double-buffered inputs + output).
    if tile_b is None:
        tb = budget_bytes // max(1, 4 * row_bytes)
        tile_b = max((tb // sub) * sub, sub)
    if tile_b >= B:
        tile_b = B                          # full-extent batch block is always legal
    else:
        tile_b = max((tile_b // sub) * sub, sub)

    # Give the 'parallel' batch axis at least 2 grid steps so v7x's two
    # TensorCores both get work; the extra ~0.35us/step is negligible.
    while pl.cdiv(B, tile_b) < 2 and tile_b >= 2 * sub:
        tile_b = max(((tile_b // 2) // sub) * sub, sub)

    # Wide-row guard: if even the minimum tile exceeds the budget, raise the
    # limit (capped under physical VMEM) so double-buffering still compiles.
    resident = 4 * tile_b * row_bytes
    if resident > budget_bytes:
        vmem_limit = min(int(physical_vmem * 0.85),
                         max(vmem_limit, int(resident * 1.25) + 4 * _MIB))
    # TODO(synk): rows wider than ~0.2*physical_vmem would also need tiling
    # along the feature axis; not needed for realistic DLRM widths.

    grid = (pl.cdiv(B, tile_b),)

    # Free row-major collapse of the last two dims (no HBM copy for a
    # default-layout producer).  If a producer hands over a non-default layout,
    # keep the array 3-D and use a (tile_b, F, D) BlockSpec instead.
    sparse_flat = sparse_features.reshape(B, fd)

    cost = pl.CostEstimate(
        flops=0,
        transcendentals=0,
        bytes_accessed=2 * B * out_width * itemsize,  # read + write every element
    )

    out = pl.pallas_call(
        _concat_kernel,
        out_shape=jax.ShapeDtypeStruct((B, out_width), dtype),
        grid_spec=pltpu.PrefetchScalarGridSpec(
            num_scalar_prefetch=0,
            grid=grid,
            in_specs=[
                pl.BlockSpec((tile_b, fd), lambda i: (i, 0)),
                pl.BlockSpec((tile_b, D), lambda i: (i, 0)),
            ],
            out_specs=pl.BlockSpec((tile_b, out_width), lambda i: (i, 0)),
        ),
        compiler_params=pltpu.CompilerParams(
            dimension_semantics=("parallel",),   # batch splits over v7x's 2 TCs
            vmem_limit_bytes=vmem_limit,
        ),
        cost_estimate=cost,
    )(sparse_flat, dense_features)
    return out


if __name__ == "__main__":
    def _ref(dense, sparse):
        return jnp.concatenate([sparse.reshape(sparse.shape[0], -1), dense], axis=1)

    key = jax.random.PRNGKey(0)

    # 1) Small shapes consistent with the module (single grid step).
    B, F, D = 2, 4, 16
    k1, k2, key = jax.random.split(key, 3)
    dense = jax.random.normal(k1, (B, D), dtype=jnp.float32)
    sparse = jax.random.normal(k2, (B, F, D), dtype=jnp.float32)
    out = jax.block_until_ready(simple_interaction_arch(dense, sparse))
    assert out.shape == (B, F * D + D), out.shape
    assert out.dtype == dense.dtype
    assert jnp.array_equal(out, _ref(dense, sparse)), "mismatch (small case)"

    # 2) Partial last tile: B not a multiple of tile_b nor of the sublane (8).
    B2 = 100
    k1, k2, key = jax.random.split(key, 3)
    dense2 = jax.random.normal(k1, (B2, D), dtype=jnp.float32)
    sparse2 = jax.random.normal(k2, (B2, F, D), dtype=jnp.float32)
    out2 = jax.block_until_ready(simple_interaction_arch(dense2, sparse2, tile_b=16))
    assert jnp.array_equal(out2, _ref(dense2, sparse2)), "mismatch (partial tile)"

    # 3) Auto-sized tiles + forced >=2 grid steps (megacore), 128-multiple F*D.
    B3, F3, D3 = 256, 8, 32
    k1, k2, key = jax.random.split(key, 3)
    dense3 = jax.random.normal(k1, (B3, D3), dtype=jnp.float32)
    sparse3 = jax.random.normal(k2, (B3, F3, D3), dtype=jnp.float32)
    out3 = jax.block_until_ready(simple_interaction_arch(dense3, sparse3))
    assert jnp.array_equal(out3, _ref(dense3, sparse3)), "mismatch (auto-sized)"

    print("KERNEL_OK")
</pallas_src>

<mosaic_0001>
module attributes {stable_mosaic.version = 11 : i64} {
  func.func @_concat_kernel(%arg0: i32, %arg1: memref<2x64xf32, #tpu.memory_space<vmem>>, %arg2: memref<2x16xf32, #tpu.memory_space<vmem>>, %arg3: memref<2x80xf32, #tpu.memory_space<vmem>>) attributes {dimension_semantics = [#tpu.dimension_semantics<parallel>], iteration_bounds = array<i64: 1>, scalar_prefetch = 0 : i64, scratch_operands = 0 : i64, tpu.core_type = #tpu.core_type<tc>, window_params = [{transform_indices = @transform_0, window_bounds = array<i64: 2, 64>}, {transform_indices = @transform_1, window_bounds = array<i64: 2, 16>}, {transform_indices = @transform_2, window_bounds = array<i64: 2, 80>}]} {
    %c0 = arith.constant 0 : index
    %c0_0 = arith.constant 0 : index
    %0 = vector.load %arg1[%c0, %c0_0] : memref<2x64xf32, #tpu.memory_space<vmem>>, vector<2x64xf32>
    %c0_1 = arith.constant 0 : index
    %c0_2 = arith.constant 0 : index
    %1 = vector.load %arg3[%c0_1, %c0_2] : memref<2x80xf32, #tpu.memory_space<vmem>>, vector<2x64xf32>
    tpu.vector_store %arg3[%c0_1, %c0_2], %0 {strides = array<i32>} : memref<2x80xf32, #tpu.memory_space<vmem>>, vector<2x64xf32>,
    %c0_3 = arith.constant 0 : index
    %c0_4 = arith.constant 0 : index
    %2 = vector.load %arg2[%c0_3, %c0_4] : memref<2x16xf32, #tpu.memory_space<vmem>>, vector<2x16xf32>
    %c0_5 = arith.constant 0 : index
    %c64 = arith.constant 64 : index
    %3 = vector.load %arg3[%c0_5, %c64] : memref<2x80xf32, #tpu.memory_space<vmem>>, vector<2x16xf32>
    tpu.vector_store %arg3[%c0_5, %c64], %2 {strides = array<i32>} : memref<2x80xf32, #tpu.memory_space<vmem>>, vector<2x16xf32>,
    return
  }
  func.func @transform_0(%arg0: i32) -> (i32, i32) {
    %c0_i32 = arith.constant 0 : i32
    %c0_i32_0 = arith.constant 0 : i32
    return %arg0, %c0_i32 : i32, i32
  }
  func.func @transform_1(%arg0: i32) -> (i32, i32) {
    %c0_i32 = arith.constant 0 : i32
    %c0_i32_0 = arith.constant 0 : i32
    return %arg0, %c0_i32 : i32, i32
  }
  func.func @transform_2(%arg0: i32) -> (i32, i32) {
    %c0_i32 = arith.constant 0 : i32
    %c0_i32_0 = arith.constant 0 : i32
    return %arg0, %c0_i32 : i32, i32
  }
}

</mosaic_0001>

<llo_original>
// kernel: tpu_custom_call.1
$region0: #{tpu_custom_call.1}
  #allocation0 [shape = 'u32[]', space=smem, size = 0x4, offset = 0x4, fixed_abs, tag = 'smem constant byte address 0x4 - core index']
  #allocation1 [shape = 'u32[72,128]{1,0:T(1,128)}', space=vmem, size = 0x9000, scoped, tag = 'internal scratch']
  %s0 = inlined_call_operand.hbm [shape: f32[2,64], index: 0, kind: input, shape index: {}]
  %s1 = inlined_call_operand.hbm [shape: f32[2,16], index: 1, kind: input, shape index: {}]
  %s2 = inlined_call_operand.hbm [shape: f32[2,80], index: 2, kind: output, shape index: {}]
  %s3 = sld [smem:[#allocation0]]
  $region26: #{tpu_custom_call.1} parent=0
    _
  %s5 = ssub.s32 1, %s3
  %s6 = scalar_select 0, %s5, %s3
  $region1: #{tpu_custom_call.1} parent=0
    #allocation2 [shape = 'u8[1024]{0}', space=vmem, size = 0x400, scoped, tag = 'input window, operand 0, single buffered']
    #allocation3 [shape = 's32[1]{0}', space=sflag, size = 0x4, scoped, tag = 'scoped memory for tpu_custom_call.1']
    #allocation4 [shape = 's32[1]{0}', space=sflag, size = 0x4, scoped, tag = 'scoped memory for tpu_custom_call.1']
    #allocation5 [shape = 'u8[1024]{0}', space=vmem, size = 0x400, scoped, tag = 'input window, operand 1, single buffered']
    #allocation6 [shape = 's32[1]{0}', space=sflag, size = 0x4, scoped, tag = 'scoped memory for tpu_custom_call.1']
    #allocation7 [shape = 'u8[1024]{0}', space=vmem, size = 0x400, scoped, tag = 'output window, operand 0, single buffered']
    %7 = vsyncpa [#allocation3], 0
    %8 = vsyncpa [#allocation6], 0
    %9 = vsyncpa [#allocation4], 0
    // Predicated region
    $region2: #{tpu_custom_call.1} parent=1 // pred_check
      _
    $region3: #{tpu_custom_call.1} parent=1 // pred_check_branch
      %11 = sbr.rel (0) target = $region5
    $region4: #{tpu_custom_call.1} parent=1 // pred_region
      %13 = vsyncadd [#allocation3], 0
      %s15 = sshll.u32 %s0, 4
      %s16 = int_to_ptr.hbm [resolvable:$true] %s15
      %s17 = sshll.u32 [#allocation2], 4
      %s18 = int_to_ptr.vmem [resolvable:$true] %s17
      %20 = dma.hbm_to_vmem [thread:$0]  %s16, 32, %s18, [#allocation3]
    $region5: #{tpu_custom_call.1} parent=1 // pred_fallthru
      _
    // Predicated region
    $region6: #{tpu_custom_call.1} parent=1 // pred_check
      _
    $region7: #{tpu_custom_call.1} parent=1 // pred_check_branch
      %22 = sbr.rel (0) target = $region9
    $region8: #{tpu_custom_call.1} parent=1 // pred_region
      %24 = vsyncadd [#allocation6], 0
      %s26 = sshll.u32 %s1, 4
      %s27 = int_to_ptr.hbm [resolvable:$true] %s26
      %s28 = sshll.u32 [#allocation5], 4
      %s29 = int_to_ptr.vmem [resolvable:$true] %s28
      %31 = dma.hbm_to_vmem [thread:$0]  %s27, 32, %s29, [#allocation6]
    $region9: #{tpu_custom_call.1} parent=1 // pred_fallthru
      _
    // Predicated region
    $region10: #{tpu_custom_call.1} parent=1 // pred_check
      _
    $region11: #{tpu_custom_call.1} parent=1 // pred_check_branch
      %33 = sbr.rel (0) target = $region13
    $region12: #{tpu_custom_call.1} parent=1 // pred_region
      %35 = dma.done [#allocation3], 32
    $region13: #{tpu_custom_call.1} parent=1 // pred_fallthru
      _
    // Predicated region
    $region14: #{tpu_custom_call.1} parent=1 // pred_check
      _
    $region15: #{tpu_custom_call.1} parent=1 // pred_check_branch
      %37 = sbr.rel (0) target = $region17
    $region16: #{tpu_custom_call.1} parent=1 // pred_region
      %39 = dma.done [#allocation6], 32
    $region17: #{tpu_custom_call.1} parent=1 // pred_fallthru
      _
    %v40 = vld [vmem:[#allocation2] sm:$0x3]
    %vm41 = vcmask 517120
    %42 = vst.msk [vmem:[#allocation7] sm:$0x3] %vm41, %v40
    %v43 = vld [vmem:[#allocation5] sm:$0x3]
    %45 = vrot.lane.b32.xlu0 %v43, 64
    %v46 = vpop.permute.xlu0 %45
    %vm48 = vcmask 648704
    %49 = vst.msk [vmem:[#allocation7] sm:$0x3] %vm48, %v46
    // Predicated region
    $region18: #{tpu_custom_call.1} parent=1 // pred_check
      _
    $region19: #{tpu_custom_call.1} parent=1 // pred_check_branch
      %51 = sbr.rel (0) target = $region21
    $region20: #{tpu_custom_call.1} parent=1 // pred_region
      %53 = vsyncadd [#allocation4], 0
      %s55 = sshll.u32 [#allocation7], 4
      %s56 = int_to_ptr.vmem [resolvable:$true] %s55
      %s57 = sshll.u32 %s2, 4
      %s58 = int_to_ptr.hbm [resolvable:$true] %s57
      %60 = dma.vmem_to_hbm [thread:$0]  %s56, 32, %s58, [#allocation4]
    $region21: #{tpu_custom_call.1} parent=1 // pred_fallthru
      _
    // Predicated region
    $region22: #{tpu_custom_call.1} parent=1 // pred_check
      _
    $region23: #{tpu_custom_call.1} parent=1 // pred_check_branch
      %62 = sbr.rel (0) target = $region25
    $region24: #{tpu_custom_call.1} parent=1 // pred_region
      %64 = dma.done [#allocation4], 32
    $region25: #{tpu_custom_call.1} parent=1 // pred_fallthru
      _
    %65 = vsyncpa [#allocation3], 1
    %66 = vsyncpa [#allocation6], 1
    %67 = vsyncpa [#allocation4], 1

</llo_original>
